<compile_context>
chip_gen: v5e
topology: v5e:2x2
jax: 0.10.0
libtpu: 0.0.40
codegen_flags: <defaults>
</compile_context>

<pallas_src>
import functools

import jax
import jax.numpy as jnp
from jax.experimental import pallas as pl
from jax.experimental.pallas import tpu as pltpu

LANE = 128      # pad every feature dim to a multiple of this (lane-dense)
ROW_TILE = 128  # node-row tile for the large-N fallback path


def _round_up(n, m):
    return (n + m - 1) // m * m


def _pad2d(x, rows, cols):
    r, c = x.shape
    return jnp.pad(x, ((0, rows - r), (0, cols - c)))


def _vmem_limit_bytes():
    """Generation-aware VMEM budget (v7x: 64 MiB physical, v5e/v6e: 128 MiB)."""
    cap = 64 * 1024 * 1024  # conservative default if query fails
    try:
        info = pltpu.get_tpu_info()
        cap = int(getattr(info, "vmem_capacity_bytes", cap))
    except Exception:
        pass
    return int(min(cap * 3 // 4, 96 * 1024 * 1024))


# ----------------------------------------------------------------------------
# Kernel 1 (primary): fully fused forward, single grid step, everything VMEM-
# resident.  conv0 + relu + conv1 + relu + mean-pool + relu + linear0 + relu +
# linear1.  (dropout = identity in eval mode.)
# ----------------------------------------------------------------------------
def gcn_fused_kernel(a_ref, x_ref, p_ref, w0_ref, b0_ref, w1_ref, b1_ref,
                     wl0_ref, bl0_ref, wl1_ref, bl1_ref, o_ref):
    # conv0: H1 = relu( (A @ X) @ W0 + b0 )   — A-contraction bf16, @W in f32
    ax = jnp.dot(a_ref[...], x_ref[...], preferred_element_type=jnp.float32)
    h1 = jnp.maximum(
        jnp.dot(ax, w0_ref[...], preferred_element_type=jnp.float32)
        + b0_ref[...], 0.0)
    # conv1: H2 = relu( (A @ H1) @ W1 + b1 )
    ah = jnp.dot(a_ref[...], h1.astype(jnp.bfloat16),
                 preferred_element_type=jnp.float32)
    h2 = jnp.maximum(
        jnp.dot(ah, w1_ref[...], preferred_element_type=jnp.float32)
        + b1_ref[...], 0.0)
    # global mean pool (P is G x N row-normalized one-hot) then relu_()
    g = jnp.maximum(
        jnp.dot(p_ref[...], h2.astype(jnp.bfloat16),
                preferred_element_type=jnp.float32), 0.0)
    # linear0 + relu (dropout = identity)
    g = jnp.maximum(
        jnp.dot(g, wl0_ref[...], preferred_element_type=jnp.float32)
        + bl0_ref[...], 0.0)
    # linear1 (output layer, no activation)
    o_ref[...] = (jnp.dot(g, wl1_ref[...], preferred_element_type=jnp.float32)
                  + bl1_ref[...]).astype(o_ref.dtype)


def gcn_fused(a_bf16, x_bf16, p_bf16, w0, b0, w1, b1, wl0, bl0, wl1, bl1):
    g_pad = p_bf16.shape[0]
    f_out = wl1.shape[1]
    return pl.pallas_call(
        gcn_fused_kernel,
        out_shape=jax.ShapeDtypeStruct((g_pad, f_out), jnp.float32),
        compiler_params=pltpu.CompilerParams(
            vmem_limit_bytes=_vmem_limit_bytes()),
    )(a_bf16, x_bf16, p_bf16, w0, b0, w1, b1, wl0, bl0, wl1, bl1)


# ----------------------------------------------------------------------------
# Kernel 2 (large-N fallback): one GCN conv layer, row-tiled.
#   H_out[i*tm:(i+1)*tm] = relu( A_hat[i*tm:(i+1)*tm, :] @ H_in @ W + b )
# H_in, W, b are fully VMEM-resident (constant index_map); reduction axis is
# collapsed (tk = N) so no accumulator scratch / init / finalize is needed.
# ----------------------------------------------------------------------------
def gcn_conv_kernel(a_ref, h_ref, w_ref, b_ref, o_ref):
    ax = jnp.dot(a_ref[...], h_ref[...], preferred_element_type=jnp.float32)
    y = jnp.dot(ax, w_ref[...], preferred_element_type=jnp.float32) + b_ref[...]
    o_ref[...] = jnp.maximum(y, 0.0).astype(o_ref.dtype)  # dropout = identity


def gcn_conv(a_bf16, h_bf16, w_f32, b_f32, *, tm=ROW_TILE):
    # tm=128 keeps >=2 "parallel" row tiles for v7x's two TensorCores and maps
    # natively to v5e's 4x128x128 MXU; use tm=256 when targeting v6e.
    n = a_bf16.shape[0]
    f_in = h_bf16.shape[1]
    f_out = w_f32.shape[1]
    return pl.pallas_call(
        gcn_conv_kernel,
        out_shape=jax.ShapeDtypeStruct((n, f_out), jnp.bfloat16),
        grid=(n // tm,),
        in_specs=[
            pl.BlockSpec((tm, n), lambda i: (i, 0)),        # A_hat row stripe
            pl.BlockSpec((n, f_in), lambda i: (0, 0)),      # H_in resident
            pl.BlockSpec((f_in, f_out), lambda i: (0, 0)),  # W resident
            pl.BlockSpec((1, f_out), lambda i: (0, 0)),     # bias resident
        ],
        out_specs=pl.BlockSpec((tm, f_out), lambda i: (i, 0)),
        compiler_params=pltpu.CompilerParams(
            dimension_semantics=("parallel",),
            vmem_limit_bytes=_vmem_limit_bytes(),
        ),
    )(a_bf16, h_bf16, w_f32, b_f32)


# ----------------------------------------------------------------------------
# Kernel 3 (large-N fallback): mean-pool + relu_() + linear0 + relu + linear1.
# ----------------------------------------------------------------------------
def pool_head_kernel(p_ref, h_ref, wl0_ref, bl0_ref, wl1_ref, bl1_ref, o_ref):
    g = jnp.maximum(
        jnp.dot(p_ref[...], h_ref[...], preferred_element_type=jnp.float32), 0.0)
    g = jnp.maximum(
        jnp.dot(g, wl0_ref[...], preferred_element_type=jnp.float32)
        + bl0_ref[...], 0.0)
    o_ref[...] = (jnp.dot(g, wl1_ref[...], preferred_element_type=jnp.float32)
                  + bl1_ref[...]).astype(o_ref.dtype)


def pool_head(p_bf16, h_bf16, wl0, bl0, wl1, bl1):
    g_pad = p_bf16.shape[0]
    f_out = wl1.shape[1]
    return pl.pallas_call(
        pool_head_kernel,
        out_shape=jax.ShapeDtypeStruct((g_pad, f_out), jnp.float32),
        compiler_params=pltpu.CompilerParams(
            vmem_limit_bytes=_vmem_limit_bytes()),
    )(p_bf16, h_bf16, wl0, bl0, wl1, bl1)


# ----------------------------------------------------------------------------
# Full forward: pad to TPU-friendly shapes, pick fused vs tiled path.
# ----------------------------------------------------------------------------
def gcn_forward(a_hat, x, w0, b0, w1, b1, pool_mat, wl0, bl0, wl1, bl1,
                *, n_outputs, force_gridded=False):
    num_graphs, n = pool_mat.shape

    n_pad = _round_up(n, ROW_TILE)
    g_pad = _round_up(num_graphs, 16)           # bf16 min tile is (16, 128)
    f_in = _round_up(x.shape[1], LANE)
    h0 = _round_up(w0.shape[1], LANE)
    h1 = _round_up(w1.shape[1], LANE)
    l0 = _round_up(wl0.shape[1], LANE)
    out_pad = _round_up(wl1.shape[1], LANE)

    # bf16 MXU operands for the big N x N contractions; padded rows/cols of
    # A_hat and P are zero so padded nodes/graphs never reach real outputs;
    # padded weight/bias columns are zero so padded lanes stay zero.
    a_p = _pad2d(a_hat, n_pad, n_pad).astype(jnp.bfloat16)
    x_p = _pad2d(x, n_pad, f_in).astype(jnp.bfloat16)
    p_p = _pad2d(pool_mat, g_pad, n_pad).astype(jnp.bfloat16)

    # The @W / head matmuls are tiny -> keep them (and biases) in f32.
    w0_p = _pad2d(w0, f_in, h0).astype(jnp.float32)
    b0_p = _pad2d(b0, 1, h0).astype(jnp.float32)
    w1_p = _pad2d(w1, h0, h1).astype(jnp.float32)
    b1_p = _pad2d(b1, 1, h1).astype(jnp.float32)
    wl0_p = _pad2d(wl0, h1, l0).astype(jnp.float32)
    bl0_p = _pad2d(bl0, 1, l0).astype(jnp.float32)
    wl1_p = _pad2d(wl1, l0, out_pad).astype(jnp.float32)
    bl1_p = _pad2d(bl1, 1, out_pad).astype(jnp.float32)

    # Rough VMEM footprint of the fully fused kernel (resident A dominates).
    fused_bytes = (2 * n_pad * n_pad                       # A_hat bf16
                   + 8 * n_pad * max(f_in, h0, h1)         # live f32 H temps
                   + 2 * g_pad * n_pad                     # pool matrix
                   + (1 << 20))                            # weights + slack
    if (not force_gridded) and fused_bytes <= _vmem_limit_bytes():
        # One kernel launch, zero intermediate HBM traffic.
        out = gcn_fused(a_p, x_p, p_p, w0_p, b0_p, w1_p, b1_p,
                        wl0_p, bl0_p, wl1_p, bl1_p)
    else:
        # Large-N path: row-tiled convs with resident H + small epilogue call.
        # TODO(synk): for very large / sparse batched graphs, replace the dense
        # O(N^2) A_hat with a CSR gather-accumulate kernel using
        # PrefetchScalarGridSpec scalar prefetch of row offsets / column ids.
        h = gcn_conv(a_p, x_p, w0_p, b0_p)      # conv0 + relu
        h = gcn_conv(a_p, h, w1_p, b1_p)        # conv1 + relu
        out = pool_head(p_p, h, wl0_p, bl0_p, wl1_p, bl1_p)
    return out[:num_graphs, :n_outputs]


# ----------------------------------------------------------------------------
# Plain-JAX glue: normalized adjacency and mean-pool matrix
# ----------------------------------------------------------------------------
def build_normalized_adjacency(edge_index, edge_weight, num_nodes):
    """A_hat = D^-1/2 (A + I_remaining) D^-1/2, matching PyG gcn_norm defaults."""
    src = edge_index[0]
    dst = edge_index[1]
    adj = jnp.zeros((num_nodes, num_nodes), dtype=jnp.float32)
    adj = adj.at[dst, src].add(edge_weight)          # message flows src -> dst
    # add_remaining_self_loops: only nodes WITHOUT an existing self loop get +1
    has_self = jnp.zeros((num_nodes,), jnp.float32).at[dst].max(
        (src == dst).astype(jnp.float32))
    adj = adj + jnp.diag(jnp.where(has_self > 0, 0.0, 1.0))
    deg = jnp.sum(adj, axis=1)
    d_inv_sqrt = jnp.where(deg > 0, 1.0 / jnp.sqrt(deg), 0.0)
    return adj * d_inv_sqrt[:, None] * d_inv_sqrt[None, :]


def build_mean_pool_matrix(batch, num_graphs):
    one_hot = (batch[None, :] == jnp.arange(num_graphs)[:, None]).astype(jnp.float32)
    counts = jnp.maximum(jnp.sum(one_hot, axis=1, keepdims=True), 1.0)
    return one_hot / counts  # (G, N)


# ----------------------------------------------------------------------------
# Deterministic parameter init (shapes from GCN.__init__ defaults)
# ----------------------------------------------------------------------------
def init_params(key, n_in=13, gcn_hidden=(24, 24), lin_hidden=(12,), n_out=1):
    ks = jax.random.split(key, 8)

    def glorot(k, fan_in, fan_out):
        scale = jnp.sqrt(6.0 / (fan_in + fan_out))
        return jax.random.uniform(k, (fan_in, fan_out), jnp.float32, -scale, scale)

    w0 = glorot(ks[0], n_in, gcn_hidden[0])
    b0 = jnp.zeros((1, gcn_hidden[0]), jnp.float32)
    w1 = glorot(ks[1], gcn_hidden[0], gcn_hidden[1])
    b1 = jnp.zeros((1, gcn_hidden[1]), jnp.float32)
    wl0 = glorot(ks[2], gcn_hidden[1], lin_hidden[0])
    bl0 = jax.random.uniform(ks[3], (1, lin_hidden[0]), jnp.float32, -0.1, 0.1)
    wl1 = glorot(ks[4], lin_hidden[0], n_out)
    bl1 = jax.random.uniform(ks[5], (1, n_out), jnp.float32, -0.1, 0.1)
    return w0, b0, w1, b1, wl0, bl0, wl1, bl1


if __name__ == "__main__":
    key = jax.random.PRNGKey(0)
    k_x, k_e, k_w = jax.random.split(key, 3)

    # Batch several graphs so the node axis fills 128-row MXU tiles:
    # 8 graphs x 32 nodes = 256 nodes.
    num_graphs = 8
    nodes_per_graph = 32
    num_nodes = num_graphs * nodes_per_graph
    n_input_node_feature = 13
    num_edges = 512

    x = jax.random.normal(k_x, (num_nodes, n_input_node_feature), jnp.float32)
    # random edges restricted within each graph
    src_local = jax.random.randint(k_e, (num_edges,), 0, nodes_per_graph)
    dst_local = jax.random.randint(jax.random.fold_in(k_e, 1), (num_edges,),
                                   0, nodes_per_graph)
    graph_of_edge = (jnp.arange(num_edges) % num_graphs) * nodes_per_graph
    edge_index = jnp.stack([src_local + graph_of_edge,
                            dst_local + graph_of_edge], axis=0)
    edge_attr = jnp.ones((num_edges,), jnp.float32)      # GCNConv edge_weight
    batch = jnp.repeat(jnp.arange(num_graphs), nodes_per_graph)

    a_hat = build_normalized_adjacency(edge_index, edge_attr, num_nodes)
    pool_mat = build_mean_pool_matrix(batch, num_graphs)

    params = init_params(k_w)

    # TODO(synk): dropout is treated as identity (inference / model.eval()); a
    # training-mode kernel would add pltpu.prng_random_bits-based masking.
    fwd_fused = jax.jit(functools.partial(gcn_forward, n_outputs=1))
    fwd_tiled = jax.jit(functools.partial(gcn_forward, n_outputs=1,
                                          force_gridded=True))

    out = fwd_fused(a_hat, x, *params[:4], pool_mat, *params[4:])
    out_tiled = fwd_tiled(a_hat, x, *params[:4], pool_mat, *params[4:])
    out, out_tiled = jax.block_until_ready((out, out_tiled))

    assert out.shape == (num_graphs, 1)
    assert out_tiled.shape == (num_graphs, 1)
    # The fused and row-tiled paths perform identical arithmetic.
    assert bool(jnp.allclose(out, out_tiled, rtol=1e-3, atol=1e-3))
    print("KERNEL_OK")
</pallas_src>

<mosaic_0001>
module attributes {stable_mosaic.version = 11 : i64} {
  func.func @gcn_fused_kernel(%arg0: memref<256x256xbf16, #tpu.memory_space<vmem>>, %arg1: memref<256x128xbf16, #tpu.memory_space<vmem>>, %arg2: memref<16x256xbf16, #tpu.memory_space<vmem>>, %arg3: memref<128x128xf32, #tpu.memory_space<vmem>>, %arg4: memref<1x128xf32, #tpu.memory_space<vmem>>, %arg5: memref<128x128xf32, #tpu.memory_space<vmem>>, %arg6: memref<1x128xf32, #tpu.memory_space<vmem>>, %arg7: memref<128x128xf32, #tpu.memory_space<vmem>>, %arg8: memref<1x128xf32, #tpu.memory_space<vmem>>, %arg9: memref<128x128xf32, #tpu.memory_space<vmem>>, %arg10: memref<1x128xf32, #tpu.memory_space<vmem>>, %arg11: memref<16x128xf32, #tpu.memory_space<vmem>>) attributes {dimension_semantics = [], scalar_prefetch = 0 : i64, scratch_operands = 0 : i64, tpu.core_type = #tpu.core_type<tc>} {
    %c0 = arith.constant 0 : index
    %c0_0 = arith.constant 0 : index
    %0 = vector.load %arg0[%c0, %c0_0] : memref<256x256xbf16, #tpu.memory_space<vmem>>, vector<256x256xbf16>
    %c0_1 = arith.constant 0 : index
    %c0_2 = arith.constant 0 : index
    %1 = vector.load %arg1[%c0_1, %c0_2] : memref<256x128xbf16, #tpu.memory_space<vmem>>, vector<256x128xbf16>
    %cst = arith.constant dense<0.000000e+00> : vector<256x128xf32>
    %2 = tpu.matmul %0, %1, %cst {dimension_numbers = #tpu.dot_dimension_numbers<[1], [0], [0], [1], [0, 0, 1, 1], [], []>} : vector<256x256xbf16>, vector<256x128xbf16>, vector<256x128xf32> -> vector<256x128xf32>
    %c0_3 = arith.constant 0 : index
    %c0_4 = arith.constant 0 : index
    %3 = vector.load %arg3[%c0_3, %c0_4] : memref<128x128xf32, #tpu.memory_space<vmem>>, vector<128x128xf32>
    %cst_5 = arith.constant dense<0.000000e+00> : vector<256x128xf32>
    %4 = tpu.matmul %2, %3, %cst_5 {dimension_numbers = #tpu.dot_dimension_numbers<[1], [0], [0], [1], [0, 0, 1, 1], [], []>} : vector<256x128xf32>, vector<128x128xf32>, vector<256x128xf32> -> vector<256x128xf32>
    %c0_6 = arith.constant 0 : index
    %c0_7 = arith.constant 0 : index
    %5 = vector.load %arg4[%c0_6, %c0_7] : memref<1x128xf32, #tpu.memory_space<vmem>>, vector<1x128xf32>
    %6 = vector.broadcast %5 : vector<1x128xf32> to vector<256x128xf32>
    %7 = arith.addf %4, %6 : vector<256x128xf32>
    %cst_8 = arith.constant 0.000000e+00 : f32
    %8 = vector.broadcast %cst_8 : f32 to vector<256x128xf32>
    %9 = arith.maximumf %7, %8 : vector<256x128xf32>
    %c0_9 = arith.constant 0 : index
    %c0_10 = arith.constant 0 : index
    %10 = vector.load %arg0[%c0_9, %c0_10] : memref<256x256xbf16, #tpu.memory_space<vmem>>, vector<256x256xbf16>
    %11 = arith.truncf %9 : vector<256x128xf32> to vector<256x128xbf16>
    %cst_11 = arith.constant dense<0.000000e+00> : vector<256x128xf32>
    %12 = tpu.matmul %10, %11, %cst_11 {dimension_numbers = #tpu.dot_dimension_numbers<[1], [0], [0], [1], [0, 0, 1, 1], [], []>} : vector<256x256xbf16>, vector<256x128xbf16>, vector<256x128xf32> -> vector<256x128xf32>
    %c0_12 = arith.constant 0 : index
    %c0_13 = arith.constant 0 : index
    %13 = vector.load %arg5[%c0_12, %c0_13] : memref<128x128xf32, #tpu.memory_space<vmem>>, vector<128x128xf32>
    %cst_14 = arith.constant dense<0.000000e+00> : vector<256x128xf32>
    %14 = tpu.matmul %12, %13, %cst_14 {dimension_numbers = #tpu.dot_dimension_numbers<[1], [0], [0], [1], [0, 0, 1, 1], [], []>} : vector<256x128xf32>, vector<128x128xf32>, vector<256x128xf32> -> vector<256x128xf32>
    %c0_15 = arith.constant 0 : index
    %c0_16 = arith.constant 0 : index
    %15 = vector.load %arg6[%c0_15, %c0_16] : memref<1x128xf32, #tpu.memory_space<vmem>>, vector<1x128xf32>
    %16 = vector.broadcast %15 : vector<1x128xf32> to vector<256x128xf32>
    %17 = arith.addf %14, %16 : vector<256x128xf32>
    %cst_17 = arith.constant 0.000000e+00 : f32
    %18 = vector.broadcast %cst_17 : f32 to vector<256x128xf32>
    %19 = arith.maximumf %17, %18 : vector<256x128xf32>
    %c0_18 = arith.constant 0 : index
    %c0_19 = arith.constant 0 : index
    %20 = vector.load %arg2[%c0_18, %c0_19] : memref<16x256xbf16, #tpu.memory_space<vmem>>, vector<16x256xbf16>
    %21 = arith.truncf %19 : vector<256x128xf32> to vector<256x128xbf16>
    %cst_20 = arith.constant dense<0.000000e+00> : vector<16x128xf32>
    %22 = tpu.matmul %20, %21, %cst_20 {dimension_numbers = #tpu.dot_dimension_numbers<[1], [0], [0], [1], [0, 0, 1, 1], [], []>} : vector<16x256xbf16>, vector<256x128xbf16>, vector<16x128xf32> -> vector<16x128xf32>
    %cst_21 = arith.constant 0.000000e+00 : f32
    %23 = vector.broadcast %cst_21 : f32 to vector<16x128xf32>
    %24 = arith.maximumf %22, %23 : vector<16x128xf32>
    %c0_22 = arith.constant 0 : index
    %c0_23 = arith.constant 0 : index
    %25 = vector.load %arg7[%c0_22, %c0_23] : memref<128x128xf32, #tpu.memory_space<vmem>>, vector<128x128xf32>
    %cst_24 = arith.constant dense<0.000000e+00> : vector<16x128xf32>
    %26 = tpu.matmul %24, %25, %cst_24 {dimension_numbers = #tpu.dot_dimension_numbers<[1], [0], [0], [1], [0, 0, 1, 1], [], []>} : vector<16x128xf32>, vector<128x128xf32>, vector<16x128xf32> -> vector<16x128xf32>
    %c0_25 = arith.constant 0 : index
    %c0_26 = arith.constant 0 : index
    %27 = vector.load %arg8[%c0_25, %c0_26] : memref<1x128xf32, #tpu.memory_space<vmem>>, vector<1x128xf32>
    %28 = vector.broadcast %27 : vector<1x128xf32> to vector<16x128xf32>
    %29 = arith.addf %26, %28 : vector<16x128xf32>
    %cst_27 = arith.constant 0.000000e+00 : f32
    %30 = vector.broadcast %cst_27 : f32 to vector<16x128xf32>
    %31 = arith.maximumf %29, %30 : vector<16x128xf32>
    %c0_28 = arith.constant 0 : index
    %c0_29 = arith.constant 0 : index
    %32 = vector.load %arg9[%c0_28, %c0_29] : memref<128x128xf32, #tpu.memory_space<vmem>>, vector<128x128xf32>
    %cst_30 = arith.constant dense<0.000000e+00> : vector<16x128xf32>
    %33 = tpu.matmul %31, %32, %cst_30 {dimension_numbers = #tpu.dot_dimension_numbers<[1], [0], [0], [1], [0, 0, 1, 1], [], []>} : vector<16x128xf32>, vector<128x128xf32>, vector<16x128xf32> -> vector<16x128xf32>
    %c0_31 = arith.constant 0 : index
    %c0_32 = arith.constant 0 : index
    %34 = vector.load %arg10[%c0_31, %c0_32] : memref<1x128xf32, #tpu.memory_space<vmem>>, vector<1x128xf32>
    %35 = vector.broadcast %34 : vector<1x128xf32> to vector<16x128xf32>
    %36 = arith.addf %33, %35 : vector<16x128xf32>
    %c0_33 = arith.constant 0 : index
    %c0_34 = arith.constant 0 : index
    %37 = vector.load %arg11[%c0_33, %c0_34] : memref<16x128xf32, #tpu.memory_space<vmem>>, vector<16x128xf32>
    tpu.vector_store %arg11[%c0_33, %c0_34], %36 {strides = array<i32>} : memref<16x128xf32, #tpu.memory_space<vmem>>, vector<16x128xf32>,
    return
  }
}

</mosaic_0001>

<llo_original>
// kernel: gcn_forward.1
$region0: #{gcn_forward.1}
  #allocation0 [shape = 'u32[]', space=smem, size = 0x4, offset = 0x4, fixed_abs, tag = 'smem constant byte address 0x4 - core index']
  #allocation1 [shape = 'u32[72,128]{1,0:T(1,128)}', space=vmem, size = 0x9000, scoped, tag = 'internal scratch']
  %s0 = inlined_call_operand.vmem [shape: bf16[256,256], index: 0, kind: input, shape index: {}]
  %s1 = inlined_call_operand.vmem [shape: bf16[256,128], index: 1, kind: input, shape index: {}]
  %s2 = inlined_call_operand.vmem [shape: bf16[16,256], index: 2, kind: input, shape index: {}]
  %s3 = inlined_call_operand.vmem [shape: f32[128,128], index: 3, kind: input, shape index: {}]
  %s4 = inlined_call_operand.vmem [shape: f32[1,128], index: 4, kind: input, shape index: {}]
  %s5 = inlined_call_operand.vmem [shape: f32[128,128], index: 5, kind: input, shape index: {}]
  %s6 = inlined_call_operand.vmem [shape: f32[1,128], index: 6, kind: input, shape index: {}]
  %s7 = inlined_call_operand.vmem [shape: f32[128,128], index: 7, kind: input, shape index: {}]
  %s8 = inlined_call_operand.vmem [shape: f32[1,128], index: 8, kind: input, shape index: {}]
  %s9 = inlined_call_operand.vmem [shape: f32[128,128], index: 9, kind: input, shape index: {}]
  %s10 = inlined_call_operand.vmem [shape: f32[1,128], index: 10, kind: input, shape index: {}]
  %s11 = inlined_call_operand.vmem [shape: f32[16,128], index: 11, kind: output, shape index: {}]
  %s12 = sld [smem:[#allocation0]]
  $region54: #{gcn_forward.1} parent=0
    _
  %s14 = ssub.s32 1, %s12
  %s15 = scalar_select 0, %s14, %s12
  // Predicated region
  $region2: #{gcn_forward.1} parent=0 // pred_check
    _
  $region3: #{gcn_forward.1} parent=0 // pred_check_branch
    %17 = sbr.rel (0) target = $region5
  $region4: #{gcn_forward.1} parent=0 // pred_region
    _
  $region5: #{gcn_forward.1} parent=0 // pred_fallthru
    _
  // Predicated region
  $region6: #{gcn_forward.1} parent=0 // pred_check
    _
  $region7: #{gcn_forward.1} parent=0 // pred_check_branch
    %19 = sbr.rel (0) target = $region9
  $region8: #{gcn_forward.1} parent=0 // pred_region
    _
  $region9: #{gcn_forward.1} parent=0 // pred_fallthru
    _
  // Predicated region
  $region10: #{gcn_forward.1} parent=0 // pred_check
    _
  $region11: #{gcn_forward.1} parent=0 // pred_check_branch
    %21 = sbr.rel (0) target = $region13
  $region12: #{gcn_forward.1} parent=0 // pred_region
    _
  $region13: #{gcn_forward.1} parent=0 // pred_fallthru
    _
  // Predicated region
  $region14: #{gcn_forward.1} parent=0 // pred_check
    _
  $region15: #{gcn_forward.1} parent=0 // pred_check_branch
    %23 = sbr.rel (0) target = $region17
  $region16: #{gcn_forward.1} parent=0 // pred_region
    _
  $region17: #{gcn_forward.1} parent=0 // pred_fallthru
    _
  // Predicated region
  $region18: #{gcn_forward.1} parent=0 // pred_check
    _
  $region19: #{gcn_forward.1} parent=0 // pred_check_branch
    %25 = sbr.rel (0) target = $region21
  $region20: #{gcn_forward.1} parent=0 // pred_region
    _
  $region21: #{gcn_forward.1} parent=0 // pred_fallthru
    _
  // Predicated region
  $region22: #{gcn_forward.1} parent=0 // pred_check
    _
  $region23: #{gcn_forward.1} parent=0 // pred_check_branch
    %27 = sbr.rel (0) target = $region25
  $region24: #{gcn_forward.1} parent=0 // pred_region
    _
  $region25: #{gcn_forward.1} parent=0 // pred_fallthru
    _
  // Predicated region
  $region26: #{gcn_forward.1} parent=0 // pred_check
    _
  $region27: #{gcn_forward.1} parent=0 // pred_check_branch
    %29 = sbr.rel (0) target = $region29
  $region28: #{gcn_forward.1} parent=0 // pred_region
    _
  $region29: #{gcn_forward.1} parent=0 // pred_fallthru
    _
  // Predicated region
  $region30: #{gcn_forward.1} parent=0 // pred_check
    _
  $region31: #{gcn_forward.1} parent=0 // pred_check_branch
    %31 = sbr.rel (0) target = $region33
  $region32: #{gcn_forward.1} parent=0 // pred_region
    _
  $region33: #{gcn_forward.1} parent=0 // pred_fallthru
    _
  // Predicated region
  $region34: #{gcn_forward.1} parent=0 // pred_check
    _
  $region35: #{gcn_forward.1} parent=0 // pred_check_branch
    %33 = sbr.rel (0) target = $region37
  $region36: #{gcn_forward.1} parent=0 // pred_region
    _
  $region37: #{gcn_forward.1} parent=0 // pred_fallthru
    _
  // Predicated region
  $region38: #{gcn_forward.1} parent=0 // pred_check
    _
  $region39: #{gcn_forward.1} parent=0 // pred_check_branch
    %35 = sbr.rel (0) target = $region41
  $region40: #{gcn_forward.1} parent=0 // pred_region
    _
  $region41: #{gcn_forward.1} parent=0 // pred_fallthru
    _
  // Predicated region
  $region42: #{gcn_forward.1} parent=0 // pred_check
    _
  $region43: #{gcn_forward.1} parent=0 // pred_check_branch
    %37 = sbr.rel (0) target = $region45
  $region44: #{gcn_forward.1} parent=0 // pred_region
    _
  $region45: #{gcn_forward.1} parent=0 // pred_fallthru
    _
  %v38 = vld [vmem:[%s0] sm:$0xff]
  %v39 = vld [vmem:[%s0 + $0x8] sm:$0xff]
  %v40 = vld [vmem:[%s0 + $0x10] sm:$0xff]
  %v41 = vld [vmem:[%s0 + $0x18] sm:$0xff]
  %v42 = vld [vmem:[%s0 + $0x20] sm:$0xff]
  %v43 = vld [vmem:[%s0 + $0x28] sm:$0xff]
  %v44 = vld [vmem:[%s0 + $0x30] sm:$0xff]
  %v45 = vld [vmem:[%s0 + $0x38] sm:$0xff]
  %v46 = vld [vmem:[%s0 + $0x40] sm:$0xff]
  %v47 = vld [vmem:[%s0 + $0x48] sm:$0xff]
  %v48 = vld [vmem:[%s0 + $0x50] sm:$0xff]
  %v49 = vld [vmem:[%s0 + $0x58] sm:$0xff]
  %v50 = vld [vmem:[%s0 + $0x60] sm:$0xff]
  %v51 = vld [vmem:[%s0 + $0x68] sm:$0xff]
  %v52 = vld [vmem:[%s0 + $0x70] sm:$0xff]
  %v53 = vld [vmem:[%s0 + $0x78] sm:$0xff]
  %v54 = vld [vmem:[%s0 + $0x80] sm:$0xff]
  %v55 = vld [vmem:[%s0 + $0x88] sm:$0xff]
  %v56 = vld [vmem:[%s0 + $0x90] sm:$0xff]
  %v57 = vld [vmem:[%s0 + $0x98] sm:$0xff]
  %v58 = vld [vmem:[%s0 + $0xa0] sm:$0xff]
  %v59 = vld [vmem:[%s0 + $0xa8] sm:$0xff]
  %v60 = vld [vmem:[%s0 + $0xb0] sm:$0xff]
  %v61 = vld [vmem:[%s0 + $0xb8] sm:$0xff]
  %v62 = vld [vmem:[%s0 + $0xc0] sm:$0xff]
  %v63 = vld [vmem:[%s0 + $0xc8] sm:$0xff]
  %v64 = vld [vmem:[%s0 + $0xd0] sm:$0xff]
  %v65 = vld [vmem:[%s0 + $0xd8] sm:$0xff]
  %v66 = vld [vmem:[%s0 + $0xe0] sm:$0xff]
  %v67 = vld [vmem:[%s0 + $0xe8] sm:$0xff]
  %v68 = vld [vmem:[%s0 + $0xf0] sm:$0xff]
  %v69 = vld [vmem:[%s0 + $0xf8] sm:$0xff]
  %v70 = vld [vmem:[%s1] sm:$0xf]
  %v71 = vld [vmem:[%s1 + $0x4] sm:$0xf]
  %v72 = vld [vmem:[%s1 + $0x8] sm:$0xf]
  %v73 = vld [vmem:[%s1 + $0xc] sm:$0xf]
  %v74 = vld [vmem:[%s1 + $0x10] sm:$0xf]
  %v75 = vld [vmem:[%s1 + $0x14] sm:$0xf]
  %v76 = vld [vmem:[%s1 + $0x18] sm:$0xf]
  %v77 = vld [vmem:[%s1 + $0x1c] sm:$0xf]
  %v78 = vld [vmem:[%s1 + $0x20] sm:$0xf]
  %v79 = vld [vmem:[%s1 + $0x24] sm:$0xf]
  %v80 = vld [vmem:[%s1 + $0x28] sm:$0xf]
  %v81 = vld [vmem:[%s1 + $0x2c] sm:$0xf]
  %v82 = vld [vmem:[%s1 + $0x30] sm:$0xf]
  %v83 = vld [vmem:[%s1 + $0x34] sm:$0xf]
  %v84 = vld [vmem:[%s1 + $0x38] sm:$0xf]
  %v85 = vld [vmem:[%s1 + $0x3c] sm:$0xf]
  %v86 = vld [vmem:[%s1 + $0x40] sm:$0xf]
  %v87 = vld [vmem:[%s1 + $0x44] sm:$0xf]
  %v88 = vld [vmem:[%s1 + $0x48] sm:$0xf]
  %v89 = vld [vmem:[%s1 + $0x4c] sm:$0xf]
  %v90 = vld [vmem:[%s1 + $0x50] sm:$0xf]
  %v91 = vld [vmem:[%s1 + $0x54] sm:$0xf]
  %v92 = vld [vmem:[%s1 + $0x58] sm:$0xf]
  %v93 = vld [vmem:[%s1 + $0x5c] sm:$0xf]
  %v94 = vld [vmem:[%s1 + $0x60] sm:$0xf]
  %v95 = vld [vmem:[%s1 + $0x64] sm:$0xf]
  %v96 = vld [vmem:[%s1 + $0x68] sm:$0xf]
  %v97 = vld [vmem:[%s1 + $0x6c] sm:$0xf]
  %v98 = vld [vmem:[%s1 + $0x70] sm:$0xf]
  %v99 = vld [vmem:[%s1 + $0x74] sm:$0xf]
  %v100 = vld [vmem:[%s1 + $0x78] sm:$0xf]
  %v101 = vld [vmem:[%s1 + $0x7c] sm:$0xf]
  %v134 = vunpack.c.l.b16 %v38
  %v135 = vunpack.c.h.b16 %v38
  %v136 = vunpack.c.l.b16 %v39
  %v137 = vunpack.c.h.b16 %v39
  %v138 = vunpack.c.l.b16 %v40
  %v139 = vunpack.c.h.b16 %v40
  %v140 = vunpack.c.l.b16 %v41
  %v141 = vunpack.c.h.b16 %v41
  %v142 = vunpack.c.l.b16 %v42
  %v143 = vunpack.c.h.b16 %v42
  %v144 = vunpack.c.l.b16 %v43
  %v145 = vunpack.c.h.b16 %v43
  %v146 = vunpack.c.l.b16 %v44
  %v147 = vunpack.c.h.b16 %v44
  %v148 = vunpack.c.l.b16 %v45
  %v149 = vunpack.c.h.b16 %v45
  %v150 = vunpack.c.l.b16 %v46
  %v151 = vunpack.c.h.b16 %v46
  %v152 = vunpack.c.l.b16 %v47
  %v153 = vunpack.c.h.b16 %v47
  %v154 = vunpack.c.l.b16 %v48
  %v155 = vunpack.c.h.b16 %v48
  %v156 = vunpack.c.l.b16 %v49
  %v157 = vunpack.c.h.b16 %v49
  %v158 = vunpack.c.l.b16 %v50
  %v159 = vunpack.c.h.b16 %v50
  %v160 = vunpack.c.l.b16 %v51
  %v161 = vunpack.c.h.b16 %v51
  %v162 = vunpack.c.l.b16 %v52
  %v163 = vunpack.c.h.b16 %v52
  %v164 = vunpack.c.l.b16 %v53
  %v165 = vunpack.c.h.b16 %v53
  %v166 = vunpack.c.l.b16 %v54
  %v167 = vunpack.c.h.b16 %v54
  %v168 = vunpack.c.l.b16 %v55
  %v169 = vunpack.c.h.b16 %v55
  %v170 = vunpack.c.l.b16 %v56
  %v171 = vunpack.c.h.b16 %v56
  %v172 = vunpack.c.l.b16 %v57
  %v173 = vunpack.c.h.b16 %v57
  %v174 = vunpack.c.l.b16 %v58
  %v175 = vunpack.c.h.b16 %v58
  %v176 = vunpack.c.l.b16 %v59
  %v177 = vunpack.c.h.b16 %v59
  %v178 = vunpack.c.l.b16 %v60
  %v179 = vunpack.c.h.b16 %v60
  %v180 = vunpack.c.l.b16 %v61
  %v181 = vunpack.c.h.b16 %v61
  %v182 = vunpack.c.l.b16 %v62
  %v183 = vunpack.c.h.b16 %v62
  %v184 = vunpack.c.l.b16 %v63
  %v185 = vunpack.c.h.b16 %v63
  %v186 = vunpack.c.l.b16 %v64
  %v187 = vunpack.c.h.b16 %v64
  %v188 = vunpack.c.l.b16 %v65
  %v189 = vunpack.c.h.b16 %v65
  %v190 = vunpack.c.l.b16 %v66
  %v191 = vunpack.c.h.b16 %v66
  %v192 = vunpack.c.l.b16 %v67
  %v193 = vunpack.c.h.b16 %v67
  %v194 = vunpack.c.l.b16 %v68
  %v195 = vunpack.c.h.b16 %v68
  %v196 = vunpack.c.l.b16 %v69
  %v197 = vunpack.c.h.b16 %v69
  %v198 = vpack.c.b16 %v136, %v134
  %v199 = vpack.c.b16 %v137, %v135
  %v200 = vpack.c.b16 %v140, %v138
  %v201 = vpack.c.b16 %v141, %v139
  %v202 = vpack.c.b16 %v144, %v142
  %v203 = vpack.c.b16 %v145, %v143
  %v204 = vpack.c.b16 %v148, %v146
  %v205 = vpack.c.b16 %v149, %v147
  %v206 = vpack.c.b16 %v152, %v150
  %v207 = vpack.c.b16 %v153, %v151
  %v208 = vpack.c.b16 %v156, %v154
  %v209 = vpack.c.b16 %v157, %v155
  %v210 = vpack.c.b16 %v160, %v158
  %v211 = vpack.c.b16 %v161, %v159
  %v212 = vpack.c.b16 %v164, %v162
  %v213 = vpack.c.b16 %v165, %v163
  %v214 = vpack.c.b16 %v168, %v166
  %v215 = vpack.c.b16 %v169, %v167
  %v216 = vpack.c.b16 %v172, %v170
  %v217 = vpack.c.b16 %v173, %v171
  %v218 = vpack.c.b16 %v176, %v174
  %v219 = vpack.c.b16 %v177, %v175
  %v220 = vpack.c.b16 %v180, %v178
  %v221 = vpack.c.b16 %v181, %v179
  %v222 = vpack.c.b16 %v184, %v182
  %v223 = vpack.c.b16 %v185, %v183
  %v224 = vpack.c.b16 %v188, %v186
  %v225 = vpack.c.b16 %v189, %v187
  %v226 = vpack.c.b16 %v192, %v190
  %v227 = vpack.c.b16 %v193, %v191
  %v228 = vpack.c.b16 %v196, %v194
  %v229 = vpack.c.b16 %v197, %v195
  %v294 = vunpack.c.l.b16 %v70
  %v295 = vunpack.c.l.b16 %v71
  %v296 = vunpack.c.l.b16 %v72
  %v297 = vunpack.c.l.b16 %v73
  %v298 = vunpack.c.l.b16 %v74
  %v299 = vunpack.c.l.b16 %v75
  %v300 = vunpack.c.l.b16 %v76
  %v301 = vunpack.c.l.b16 %v77
  %v302 = vunpack.c.l.b16 %v78
  %v303 = vunpack.c.l.b16 %v79
  %v304 = vunpack.c.l.b16 %v80
  %v305 = vunpack.c.l.b16 %v81
  %v306 = vunpack.c.l.b16 %v82
  %v307 = vunpack.c.l.b16 %v83
  %v308 = vunpack.c.l.b16 %v84
  %v309 = vunpack.c.l.b16 %v85
  %v310 = vunpack.c.l.b16 %v86
  %v311 = vunpack.c.l.b16 %v87
  %v312 = vunpack.c.l.b16 %v88
  %v313 = vunpack.c.l.b16 %v89
  %v314 = vunpack.c.l.b16 %v90
  %v315 = vunpack.c.l.b16 %v91
  %v316 = vunpack.c.l.b16 %v92
  %v317 = vunpack.c.l.b16 %v93
  %v318 = vunpack.c.l.b16 %v94
  %v319 = vunpack.c.l.b16 %v95
  %v320 = vunpack.c.l.b16 %v96
  %v321 = vunpack.c.l.b16 %v97
  %v322 = vunpack.c.l.b16 %v98
  %v323 = vunpack.c.l.b16 %v99
  %v324 = vunpack.c.l.b16 %v100
  %v325 = vunpack.c.l.b16 %v101
  %v326 = vpack.c.b16 %v295, %v294
  %v327 = vpack.c.b16 %v297, %v296
  %v328 = vpack.c.b16 %v299, %v298
  %v329 = vpack.c.b16 %v301, %v300
  %v330 = vpack.c.b16 %v303, %v302
  %v331 = vpack.c.b16 %v305, %v304
  %v332 = vpack.c.b16 %v307, %v306
  %v333 = vpack.c.b16 %v309, %v308
  %v334 = vpack.c.b16 %v311, %v310
  %v335 = vpack.c.b16 %v313, %v312
  %v336 = vpack.c.b16 %v315, %v314
  %v337 = vpack.c.b16 %v317, %v316
  %v338 = vpack.c.b16 %v319, %v318
  %v339 = vpack.c.b16 %v321, %v320
  %v340 = vpack.c.b16 %v323, %v322
  %v341 = vpack.c.b16 %v325, %v324
  %358 = vmatpush.bf16.msra.mxu0 %v333
  %359 = vmatpush.bf16.msra.mxu0 %v332
  %360 = vmatpush.bf16.msra.mxu0 %v331
  %361 = vmatpush.bf16.msra.mxu0 %v330
  %362 = vmatpush.bf16.msra.mxu0 %v329
  %363 = vmatpush.bf16.msra.mxu0 %v328
  %364 = vmatpush.bf16.msra.mxu0 %v327
  %365 = vmatpush.bf16.msra.mxu0 %v326
  %366 = vmatmul.bf16.gmra.mxu0 %v198
  %v367 = vpop.f32.mrf.mxu0
  %v368 = vadd.f32 0.0, %v367
  %v369 = vpop.f32.mrf.mxu0
  %v370 = vadd.f32 0.0, %v369
  %371 = vmatmul.bf16.gmra.mxu0 %v200
  %v372 = vpop.f32.mrf.mxu0
  %v373 = vadd.f32 0.0, %v372
  %v374 = vpop.f32.mrf.mxu0
  %v375 = vadd.f32 0.0, %v374
  %376 = vmatmul.bf16.gmra.mxu0 %v202
  %v377 = vpop.f32.mrf.mxu0
  %v378 = vadd.f32 0.0, %v377
  %v379 = vpop.f32.mrf.mxu0
  %v380 = vadd.f32 0.0, %v379
  %381 = vmatmul.bf16.gmra.mxu0 %v204
  %v382 = vpop.f32.mrf.mxu0
  %v383 = vadd.f32 0.0, %v382
  %v384 = vpop.f32.mrf.mxu0
  %v385 = vadd.f32 0.0, %v384
  %386 = vmatmul.bf16.gmra.mxu0 %v206
  %v387 = vpop.f32.mrf.mxu0
  %v388 = vadd.f32 0.0, %v387
  %v389 = vpop.f32.mrf.mxu0
  %v390 = vadd.f32 0.0, %v389
  %391 = vmatmul.bf16.gmra.mxu0 %v208
  %v392 = vpop.f32.mrf.mxu0
  %v393 = vadd.f32 0.0, %v392
  %v394 = vpop.f32.mrf.mxu0
  %v395 = vadd.f32 0.0, %v394
  %396 = vmatmul.bf16.gmra.mxu0 %v210
  %v397 = vpop.f32.mrf.mxu0
  %v398 = vadd.f32 0.0, %v397
  %v399 = vpop.f32.mrf.mxu0
  %v400 = vadd.f32 0.0, %v399
  %401 = vmatmul.bf16.gmra.mxu0 %v212
  %v402 = vpop.f32.mrf.mxu0
  %v403 = vadd.f32 0.0, %v402
  %v404 = vpop.f32.mrf.mxu0
  %v405 = vadd.f32 0.0, %v404
  %406 = vmatmul.bf16.gmra.mxu0 %v214
  %v407 = vpop.f32.mrf.mxu0
  %v408 = vadd.f32 0.0, %v407
  %v409 = vpop.f32.mrf.mxu0
  %v410 = vadd.f32 0.0, %v409
  %411 = vmatmul.bf16.gmra.mxu0 %v216
  %v412 = vpop.f32.mrf.mxu0
  %v413 = vadd.f32 0.0, %v412
  %v414 = vpop.f32.mrf.mxu0
  %v415 = vadd.f32 0.0, %v414
  %416 = vmatmul.bf16.gmra.mxu0 %v218
  %v417 = vpop.f32.mrf.mxu0
  %v418 = vadd.f32 0.0, %v417
  %v419 = vpop.f32.mrf.mxu0
  %v420 = vadd.f32 0.0, %v419
  %421 = vmatmul.bf16.gmra.mxu0 %v220
  %v422 = vpop.f32.mrf.mxu0
  %v423 = vadd.f32 0.0, %v422
  %v424 = vpop.f32.mrf.mxu0
  %v425 = vadd.f32 0.0, %v424
  %426 = vmatmul.bf16.gmra.mxu0 %v222
  %v427 = vpop.f32.mrf.mxu0
  %v428 = vadd.f32 0.0, %v427
  %v429 = vpop.f32.mrf.mxu0
  %v430 = vadd.f32 0.0, %v429
  %431 = vmatmul.bf16.gmra.mxu0 %v224
  %v432 = vpop.f32.mrf.mxu0
  %v433 = vadd.f32 0.0, %v432
  %v434 = vpop.f32.mrf.mxu0
  %v435 = vadd.f32 0.0, %v434
  %436 = vmatmul.bf16.gmra.mxu0 %v226
  %v437 = vpop.f32.mrf.mxu0
  %v438 = vadd.f32 0.0, %v437
  %v439 = vpop.f32.mrf.mxu0
  %v440 = vadd.f32 0.0, %v439
  %441 = vmatmul.bf16.gmra.mxu0 %v228
  %v442 = vpop.f32.mrf.mxu0
  %v443 = vadd.f32 0.0, %v442
  %v444 = vpop.f32.mrf.mxu0
  %v445 = vadd.f32 0.0, %v444
  %446 = vdwg.mxu0
  %447 = vmatpush.bf16.msra.mxu0 %v341
  %448 = vmatpush.bf16.msra.mxu0 %v340
  %449 = vmatpush.bf16.msra.mxu0 %v339
  %450 = vmatpush.bf16.msra.mxu0 %v338
  %451 = vmatpush.bf16.msra.mxu0 %v337
  %452 = vmatpush.bf16.msra.mxu0 %v336
  %453 = vmatpush.bf16.msra.mxu0 %v335
  %454 = vmatpush.bf16.msra.mxu0 %v334
  %455 = vmatmul.bf16.gmra.mxu0 %v199
  %v456 = vpop.f32.mrf.mxu0
  %v457 = vadd.f32 %v368, %v456
  %v458 = vpop.f32.mrf.mxu0
  %v459 = vadd.f32 %v370, %v458
  %460 = vmatmul.bf16.gmra.mxu0 %v201
  %v461 = vpop.f32.mrf.mxu0
  %v462 = vadd.f32 %v373, %v461
  %v463 = vpop.f32.mrf.mxu0
  %v464 = vadd.f32 %v375, %v463
  %465 = vmatmul.bf16.gmra.mxu0 %v203
  %v466 = vpop.f32.mrf.mxu0
  %v467 = vadd.f32 %v378, %v466
  %v468 = vpop.f32.mrf.mxu0
  %v469 = vadd.f32 %v380, %v468
  %470 = vmatmul.bf16.gmra.mxu0 %v205
  %v471 = vpop.f32.mrf.mxu0
  %v472 = vadd.f32 %v383, %v471
  %v473 = vpop.f32.mrf.mxu0
  %v474 = vadd.f32 %v385, %v473
  %475 = vmatmul.bf16.gmra.mxu0 %v207
  %v476 = vpop.f32.mrf.mxu0
  %v477 = vadd.f32 %v388, %v476
  %v478 = vpop.f32.mrf.mxu0
  %v479 = vadd.f32 %v390, %v478
  %480 = vmatmul.bf16.gmra.mxu0 %v209
  %v481 = vpop.f32.mrf.mxu0
  %v482 = vadd.f32 %v393, %v481
  %v483 = vpop.f32.mrf.mxu0
  %v484 = vadd.f32 %v395, %v483
  %485 = vmatmul.bf16.gmra.mxu0 %v211
  %v486 = vpop.f32.mrf.mxu0
  %v487 = vadd.f32 %v398, %v486
  %v488 = vpop.f32.mrf.mxu0
  %v489 = vadd.f32 %v400, %v488
  %490 = vmatmul.bf16.gmra.mxu0 %v213
  %v491 = vpop.f32.mrf.mxu0
  %v492 = vadd.f32 %v403, %v491
  %v493 = vpop.f32.mrf.mxu0
  %v494 = vadd.f32 %v405, %v493
  %495 = vmatmul.bf16.gmra.mxu0 %v215
  %v496 = vpop.f32.mrf.mxu0
  %v497 = vadd.f32 %v408, %v496
  %v498 = vpop.f32.mrf.mxu0
  %v499 = vadd.f32 %v410, %v498
  %500 = vmatmul.bf16.gmra.mxu0 %v217
  %v501 = vpop.f32.mrf.mxu0
  %v502 = vadd.f32 %v413, %v501
  %v503 = vpop.f32.mrf.mxu0
  %v504 = vadd.f32 %v415, %v503
  %505 = vmatmul.bf16.gmra.mxu0 %v219
  %v506 = vpop.f32.mrf.mxu0
  %v507 = vadd.f32 %v418, %v506
  %v508 = vpop.f32.mrf.mxu0
  %v509 = vadd.f32 %v420, %v508
  %510 = vmatmul.bf16.gmra.mxu0 %v221
  %v511 = vpop.f32.mrf.mxu0
  %v512 = vadd.f32 %v423, %v511
  %v513 = vpop.f32.mrf.mxu0
  %v514 = vadd.f32 %v425, %v513
  %515 = vmatmul.bf16.gmra.mxu0 %v223
  %v516 = vpop.f32.mrf.mxu0
  %v517 = vadd.f32 %v428, %v516
  %v518 = vpop.f32.mrf.mxu0
  %v519 = vadd.f32 %v430, %v518
  %520 = vmatmul.bf16.gmra.mxu0 %v225
  %v521 = vpop.f32.mrf.mxu0
  %v522 = vadd.f32 %v433, %v521
  %v523 = vpop.f32.mrf.mxu0
  %v524 = vadd.f32 %v435, %v523
  %525 = vmatmul.bf16.gmra.mxu0 %v227
  %v526 = vpop.f32.mrf.mxu0
  %v527 = vadd.f32 %v438, %v526
  %v528 = vpop.f32.mrf.mxu0
  %v529 = vadd.f32 %v440, %v528
  %530 = vmatmul.bf16.gmra.mxu0 %v229
  %v531 = vpop.f32.mrf.mxu0
  %v532 = vadd.f32 %v443, %v531
  %v533 = vpop.f32.mrf.mxu0
  %v534 = vadd.f32 %v445, %v533
  %535 = vdwg.mxu0
  %v536 = vld [vmem:[%s3] sm:$0xff]
  %v537 = vld [vmem:[%s3 + $0x8] sm:$0xff]
  %v538 = vld [vmem:[%s3 + $0x10] sm:$0xff]
  %v539 = vld [vmem:[%s3 + $0x18] sm:$0xff]
  %v540 = vld [vmem:[%s3 + $0x20] sm:$0xff]
  %v541 = vld [vmem:[%s3 + $0x28] sm:$0xff]
  %v542 = vld [vmem:[%s3 + $0x30] sm:$0xff]
  %v543 = vld [vmem:[%s3 + $0x38] sm:$0xff]
  %v544 = vld [vmem:[%s3 + $0x40] sm:$0xff]
  %v545 = vld [vmem:[%s3 + $0x48] sm:$0xff]
  %v546 = vld [vmem:[%s3 + $0x50] sm:$0xff]
  %v547 = vld [vmem:[%s3 + $0x58] sm:$0xff]
  %v548 = vld [vmem:[%s3 + $0x60] sm:$0xff]
  %v549 = vld [vmem:[%s3 + $0x68] sm:$0xff]
  %v550 = vld [vmem:[%s3 + $0x70] sm:$0xff]
  %v551 = vld [vmem:[%s3 + $0x78] sm:$0xff]
  %v552 = vld [vmem:[%s4] sm:$0x1]
  %v554 = vperm.slane %v552, 0
  %556 = vmatpush.msra.mxu0 %v551
  %557 = vmatpush.msra.mxu0 %v550
  %558 = vmatpush.msra.mxu0 %v549
  %559 = vmatpush.msra.mxu0 %v548
  %560 = vmatpush.msra.mxu0 %v547
  %561 = vmatpush.msra.mxu0 %v546
  %562 = vmatpush.msra.mxu0 %v545
  %563 = vmatpush.msra.mxu0 %v544
  %564 = vmatpush.msra.mxu0 %v543
  %565 = vmatpush.msra.mxu0 %v542
  %566 = vmatpush.msra.mxu0 %v541
  %567 = vmatpush.msra.mxu0 %v540
  %568 = vmatpush.msra.mxu0 %v539
  %569 = vmatpush.msra.mxu0 %v538
  %570 = vmatpush.msra.mxu0 %v537
  %571 = vmatpush.msra.mxu0 %v536
  %572 = vmatmul.f32.gmra.mxu0 %v457
  %v573 = vpop.f32.mrf.mxu0
  %v574 = vadd.f32 %v554, %v573
  %575 = vmatmul.f32.gmra.mxu0 %v459
  %v576 = vpop.f32.mrf.mxu0
  %v577 = vadd.f32 %v554, %v576
  %578 = vmatmul.f32.gmra.mxu0 %v462
  %v579 = vpop.f32.mrf.mxu0
  %v580 = vadd.f32 %v554, %v579
  %581 = vmatmul.f32.gmra.mxu0 %v464
  %v582 = vpop.f32.mrf.mxu0
  %v583 = vadd.f32 %v554, %v582
  %584 = vmatmul.f32.gmra.mxu0 %v467
  %v585 = vpop.f32.mrf.mxu0
  %v586 = vadd.f32 %v554, %v585
  %587 = vmatmul.f32.gmra.mxu0 %v469
  %v588 = vpop.f32.mrf.mxu0
  %v589 = vadd.f32 %v554, %v588
  %590 = vmatmul.f32.gmra.mxu0 %v472
  %v591 = vpop.f32.mrf.mxu0
  %v592 = vadd.f32 %v554, %v591
  %593 = vmatmul.f32.gmra.mxu0 %v474
  %v594 = vpop.f32.mrf.mxu0
  %v595 = vadd.f32 %v554, %v594
  %596 = vmatmul.f32.gmra.mxu0 %v477
  %v597 = vpop.f32.mrf.mxu0
  %v598 = vadd.f32 %v554, %v597
  %599 = vmatmul.f32.gmra.mxu0 %v479
  %v600 = vpop.f32.mrf.mxu0
  %v601 = vadd.f32 %v554, %v600
  %602 = vmatmul.f32.gmra.mxu0 %v482
  %v603 = vpop.f32.mrf.mxu0
  %v604 = vadd.f32 %v554, %v603
  %605 = vmatmul.f32.gmra.mxu0 %v484
  %v606 = vpop.f32.mrf.mxu0
  %v607 = vadd.f32 %v554, %v606
  %608 = vmatmul.f32.gmra.mxu0 %v487
  %v609 = vpop.f32.mrf.mxu0
  %v610 = vadd.f32 %v554, %v609
  %611 = vmatmul.f32.gmra.mxu0 %v489
  %v612 = vpop.f32.mrf.mxu0
  %v613 = vadd.f32 %v554, %v612
  %614 = vmatmul.f32.gmra.mxu0 %v492
  %v615 = vpop.f32.mrf.mxu0
  %v616 = vadd.f32 %v554, %v615
  %617 = vmatmul.f32.gmra.mxu0 %v494
  %v618 = vpop.f32.mrf.mxu0
  %v619 = vadd.f32 %v554, %v618
  %620 = vmatmul.f32.gmra.mxu0 %v497
  %v621 = vpop.f32.mrf.mxu0
  %v622 = vadd.f32 %v554, %v621
  %623 = vmatmul.f32.gmra.mxu0 %v499
  %v624 = vpop.f32.mrf.mxu0
  %v625 = vadd.f32 %v554, %v624
  %626 = vmatmul.f32.gmra.mxu0 %v502
  %v627 = vpop.f32.mrf.mxu0
  %v628 = vadd.f32 %v554, %v627
  %629 = vmatmul.f32.gmra.mxu0 %v504
  %v630 = vpop.f32.mrf.mxu0
  %v631 = vadd.f32 %v554, %v630
  %632 = vmatmul.f32.gmra.mxu0 %v507
  %v633 = vpop.f32.mrf.mxu0
  %v634 = vadd.f32 %v554, %v633
  %635 = vmatmul.f32.gmra.mxu0 %v509
  %v636 = vpop.f32.mrf.mxu0
  %v637 = vadd.f32 %v554, %v636
  %638 = vmatmul.f32.gmra.mxu0 %v512
  %v639 = vpop.f32.mrf.mxu0
  %v640 = vadd.f32 %v554, %v639
  %641 = vmatmul.f32.gmra.mxu0 %v514
  %v642 = vpop.f32.mrf.mxu0
  %v643 = vadd.f32 %v554, %v642
  %644 = vmatmul.f32.gmra.mxu0 %v517
  %v645 = vpop.f32.mrf.mxu0
  %v646 = vadd.f32 %v554, %v645
  %647 = vmatmul.f32.gmra.mxu0 %v519
  %v648 = vpop.f32.mrf.mxu0
  %v649 = vadd.f32 %v554, %v648
  %650 = vmatmul.f32.gmra.mxu0 %v522
  %v651 = vpop.f32.mrf.mxu0
  %v652 = vadd.f32 %v554, %v651
  %653 = vmatmul.f32.gmra.mxu0 %v524
  %v654 = vpop.f32.mrf.mxu0
  %v655 = vadd.f32 %v554, %v654
  %656 = vmatmul.f32.gmra.mxu0 %v527
  %v657 = vpop.f32.mrf.mxu0
  %v658 = vadd.f32 %v554, %v657
  %659 = vmatmul.f32.gmra.mxu0 %v529
  %v660 = vpop.f32.mrf.mxu0
  %v661 = vadd.f32 %v554, %v660
  %662 = vmatmul.f32.gmra.mxu0 %v532
  %v663 = vpop.f32.mrf.mxu0
  %v664 = vadd.f32 %v554, %v663
  %665 = vmatmul.f32.gmra.mxu0 %v534
  %v666 = vpop.f32.mrf.mxu0
  %v667 = vadd.f32 %v554, %v666
  %668 = vdwg.mxu0
  %v669 = vmax.f32 %v574, 0.0
  %v670 = vmax.f32 %v577, 0.0
  %v671 = vmax.f32 %v580, 0.0
  %v672 = vmax.f32 %v583, 0.0
  %v673 = vmax.f32 %v586, 0.0
  %v674 = vmax.f32 %v589, 0.0
  %v675 = vmax.f32 %v592, 0.0
  %v676 = vmax.f32 %v595, 0.0
  %v677 = vmax.f32 %v598, 0.0
  %v678 = vmax.f32 %v601, 0.0
  %v679 = vmax.f32 %v604, 0.0
  %v680 = vmax.f32 %v607, 0.0
  %v681 = vmax.f32 %v610, 0.0
  %v682 = vmax.f32 %v613, 0.0
  %v683 = vmax.f32 %v616, 0.0
  %v684 = vmax.f32 %v619, 0.0
  %v685 = vmax.f32 %v622, 0.0
  %v686 = vmax.f32 %v625, 0.0
  %v687 = vmax.f32 %v628, 0.0
  %v688 = vmax.f32 %v631, 0.0
  %v689 = vmax.f32 %v634, 0.0
  %v690 = vmax.f32 %v637, 0.0
  %v691 = vmax.f32 %v640, 0.0
  %v692 = vmax.f32 %v643, 0.0
  %v693 = vmax.f32 %v646, 0.0
  %v694 = vmax.f32 %v649, 0.0
  %v695 = vmax.f32 %v652, 0.0
  %v696 = vmax.f32 %v655, 0.0
  %v697 = vmax.f32 %v658, 0.0
  %v698 = vmax.f32 %v661, 0.0
  %v699 = vmax.f32 %v664, 0.0
  %v700 = vmax.f32 %v667, 0.0
  %v701 = vpack.c.bf16 %v670, %v669
  %v702 = vpack.c.bf16 %v672, %v671
  %v703 = vpack.c.bf16 %v674, %v673
  %v704 = vpack.c.bf16 %v676, %v675
  %v705 = vpack.c.bf16 %v678, %v677
  %v706 = vpack.c.bf16 %v680, %v679
  %v707 = vpack.c.bf16 %v682, %v681
  %v708 = vpack.c.bf16 %v684, %v683
  %v709 = vpack.c.bf16 %v686, %v685
  %v710 = vpack.c.bf16 %v688, %v687
  %v711 = vpack.c.bf16 %v690, %v689
  %v712 = vpack.c.bf16 %v692, %v691
  %v713 = vpack.c.bf16 %v694, %v693
  %v714 = vpack.c.bf16 %v696, %v695
  %v715 = vpack.c.bf16 %v698, %v697
  %v716 = vpack.c.bf16 %v700, %v699
  %717 = vmatpush.bf16.msra.mxu0 %v708
  %718 = vmatpush.bf16.msra.mxu0 %v707
  %719 = vmatpush.bf16.msra.mxu0 %v706
  %720 = vmatpush.bf16.msra.mxu0 %v705
  %721 = vmatpush.bf16.msra.mxu0 %v704
  %722 = vmatpush.bf16.msra.mxu0 %v703
  %723 = vmatpush.bf16.msra.mxu0 %v702
  %724 = vmatpush.bf16.msra.mxu0 %v701
  %725 = vmatmul.bf16.gmra.mxu0 %v198
  %v726 = vpop.f32.mrf.mxu0
  %v727 = vadd.f32 0.0, %v726
  %v728 = vpop.f32.mrf.mxu0
  %v729 = vadd.f32 0.0, %v728
  %730 = vmatmul.bf16.gmra.mxu0 %v200
  %v731 = vpop.f32.mrf.mxu0
  %v732 = vadd.f32 0.0, %v731
  %v733 = vpop.f32.mrf.mxu0
  %v734 = vadd.f32 0.0, %v733
  %735 = vmatmul.bf16.gmra.mxu0 %v202
  %v736 = vpop.f32.mrf.mxu0
  %v737 = vadd.f32 0.0, %v736
  %v738 = vpop.f32.mrf.mxu0
  %v739 = vadd.f32 0.0, %v738
  %740 = vmatmul.bf16.gmra.mxu0 %v204
  %v741 = vpop.f32.mrf.mxu0
  %v742 = vadd.f32 0.0, %v741
  %v743 = vpop.f32.mrf.mxu0
  %v744 = vadd.f32 0.0, %v743
  %745 = vmatmul.bf16.gmra.mxu0 %v206
  %v746 = vpop.f32.mrf.mxu0
  %v747 = vadd.f32 0.0, %v746
  %v748 = vpop.f32.mrf.mxu0
  %v749 = vadd.f32 0.0, %v748
  %750 = vmatmul.bf16.gmra.mxu0 %v208
  %v751 = vpop.f32.mrf.mxu0
  %v752 = vadd.f32 0.0, %v751
  %v753 = vpop.f32.mrf.mxu0
  %v754 = vadd.f32 0.0, %v753
  %755 = vmatmul.bf16.gmra.mxu0 %v210
  %v756 = vpop.f32.mrf.mxu0
  %v757 = vadd.f32 0.0, %v756
  %v758 = vpop.f32.mrf.mxu0
  %v759 = vadd.f32 0.0, %v758
  %760 = vmatmul.bf16.gmra.mxu0 %v212
  %v761 = vpop.f32.mrf.mxu0
  %v762 = vadd.f32 0.0, %v761
  %v763 = vpop.f32.mrf.mxu0
  %v764 = vadd.f32 0.0, %v763
  %765 = vmatmul.bf16.gmra.mxu0 %v214
  %v766 = vpop.f32.mrf.mxu0
  %v767 = vadd.f32 0.0, %v766
  %v768 = vpop.f32.mrf.mxu0
  %v769 = vadd.f32 0.0, %v768
  %770 = vmatmul.bf16.gmra.mxu0 %v216
  %v771 = vpop.f32.mrf.mxu0
  %v772 = vadd.f32 0.0, %v771
  %v773 = vpop.f32.mrf.mxu0
  %v774 = vadd.f32 0.0, %v773
  %775 = vmatmul.bf16.gmra.mxu0 %v218
  %v776 = vpop.f32.mrf.mxu0
  %v777 = vadd.f32 0.0, %v776
  %v778 = vpop.f32.mrf.mxu0
  %v779 = vadd.f32 0.0, %v778
  %780 = vmatmul.bf16.gmra.mxu0 %v220
  %v781 = vpop.f32.mrf.mxu0
  %v782 = vadd.f32 0.0, %v781
  %v783 = vpop.f32.mrf.mxu0
  %v784 = vadd.f32 0.0, %v783
  %785 = vmatmul.bf16.gmra.mxu0 %v222
  %v786 = vpop.f32.mrf.mxu0
  %v787 = vadd.f32 0.0, %v786
  %v788 = vpop.f32.mrf.mxu0
  %v789 = vadd.f32 0.0, %v788
  %790 = vmatmul.bf16.gmra.mxu0 %v224
  %v791 = vpop.f32.mrf.mxu0
  %v792 = vadd.f32 0.0, %v791
  %v793 = vpop.f32.mrf.mxu0
  %v794 = vadd.f32 0.0, %v793
  %795 = vmatmul.bf16.gmra.mxu0 %v226
  %v796 = vpop.f32.mrf.mxu0
  %v797 = vadd.f32 0.0, %v796
  %v798 = vpop.f32.mrf.mxu0
  %v799 = vadd.f32 0.0, %v798
  %800 = vmatmul.bf16.gmra.mxu0 %v228
  %v801 = vpop.f32.mrf.mxu0
  %v802 = vadd.f32 0.0, %v801
  %v803 = vpop.f32.mrf.mxu0
  %v804 = vadd.f32 0.0, %v803
  %805 = vdwg.mxu0
  %806 = vmatpush.bf16.msra.mxu0 %v716
  %807 = vmatpush.bf16.msra.mxu0 %v715
  %808 = vmatpush.bf16.msra.mxu0 %v714
  %809 = vmatpush.bf16.msra.mxu0 %v713
  %810 = vmatpush.bf16.msra.mxu0 %v712
  %811 = vmatpush.bf16.msra.mxu0 %v711
  %812 = vmatpush.bf16.msra.mxu0 %v710
  %813 = vmatpush.bf16.msra.mxu0 %v709
  %814 = vmatmul.bf16.gmra.mxu0 %v199
  %v815 = vpop.f32.mrf.mxu0
  %v816 = vadd.f32 %v727, %v815
  %v817 = vpop.f32.mrf.mxu0
  %v818 = vadd.f32 %v729, %v817
  %819 = vmatmul.bf16.gmra.mxu0 %v201
  %v820 = vpop.f32.mrf.mxu0
  %v821 = vadd.f32 %v732, %v820
  %v822 = vpop.f32.mrf.mxu0
  %v823 = vadd.f32 %v734, %v822
  %824 = vmatmul.bf16.gmra.mxu0 %v203
  %v825 = vpop.f32.mrf.mxu0
  %v826 = vadd.f32 %v737, %v825
  %v827 = vpop.f32.mrf.mxu0
  %v828 = vadd.f32 %v739, %v827
  %829 = vmatmul.bf16.gmra.mxu0 %v205
  %v830 = vpop.f32.mrf.mxu0
  %v831 = vadd.f32 %v742, %v830
  %v832 = vpop.f32.mrf.mxu0
  %v833 = vadd.f32 %v744, %v832
  %834 = vmatmul.bf16.gmra.mxu0 %v207
  %v835 = vpop.f32.mrf.mxu0
  %v836 = vadd.f32 %v747, %v835
  %v837 = vpop.f32.mrf.mxu0
  %v838 = vadd.f32 %v749, %v837
  %839 = vmatmul.bf16.gmra.mxu0 %v209
  %v840 = vpop.f32.mrf.mxu0
  %v841 = vadd.f32 %v752, %v840
  %v842 = vpop.f32.mrf.mxu0
  %v843 = vadd.f32 %v754, %v842
  %844 = vmatmul.bf16.gmra.mxu0 %v211
  %v845 = vpop.f32.mrf.mxu0
  %v846 = vadd.f32 %v757, %v845
  %v847 = vpop.f32.mrf.mxu0
  %v848 = vadd.f32 %v759, %v847
  %849 = vmatmul.bf16.gmra.mxu0 %v213
  %v850 = vpop.f32.mrf.mxu0
  %v851 = vadd.f32 %v762, %v850
  %v852 = vpop.f32.mrf.mxu0
  %v853 = vadd.f32 %v764, %v852
  %854 = vmatmul.bf16.gmra.mxu0 %v215
  %v855 = vpop.f32.mrf.mxu0
  %v856 = vadd.f32 %v767, %v855
  %v857 = vpop.f32.mrf.mxu0
  %v858 = vadd.f32 %v769, %v857
  %859 = vmatmul.bf16.gmra.mxu0 %v217
  %v860 = vpop.f32.mrf.mxu0
  %v861 = vadd.f32 %v772, %v860
  %v862 = vpop.f32.mrf.mxu0
  %v863 = vadd.f32 %v774, %v862
  %864 = vmatmul.bf16.gmra.mxu0 %v219
  %v865 = vpop.f32.mrf.mxu0
  %v866 = vadd.f32 %v777, %v865
  %v867 = vpop.f32.mrf.mxu0
  %v868 = vadd.f32 %v779, %v867
  %869 = vmatmul.bf16.gmra.mxu0 %v221
  %v870 = vpop.f32.mrf.mxu0
  %v871 = vadd.f32 %v782, %v870
  %v872 = vpop.f32.mrf.mxu0
  %v873 = vadd.f32 %v784, %v872
  %874 = vmatmul.bf16.gmra.mxu0 %v223
  %v875 = vpop.f32.mrf.mxu0
  %v876 = vadd.f32 %v787, %v875
  %v877 = vpop.f32.mrf.mxu0
  %v878 = vadd.f32 %v789, %v877
  %879 = vmatmul.bf16.gmra.mxu0 %v225
  %v880 = vpop.f32.mrf.mxu0
  %v881 = vadd.f32 %v792, %v880
  %v882 = vpop.f32.mrf.mxu0
  %v883 = vadd.f32 %v794, %v882
  %884 = vmatmul.bf16.gmra.mxu0 %v227
  %v885 = vpop.f32.mrf.mxu0
  %v886 = vadd.f32 %v797, %v885
  %v887 = vpop.f32.mrf.mxu0
  %v888 = vadd.f32 %v799, %v887
  %889 = vmatmul.bf16.gmra.mxu0 %v229
  %v890 = vpop.f32.mrf.mxu0
  %v891 = vadd.f32 %v802, %v890
  %v892 = vpop.f32.mrf.mxu0
  %v893 = vadd.f32 %v804, %v892
  %894 = vdwg.mxu0
  %v895 = vld [vmem:[%s5] sm:$0xff]
  %v896 = vld [vmem:[%s5 + $0x8] sm:$0xff]
  %v897 = vld [vmem:[%s5 + $0x10] sm:$0xff]
  %v898 = vld [vmem:[%s5 + $0x18] sm:$0xff]
  %v899 = vld [vmem:[%s5 + $0x20] sm:$0xff]
  %v900 = vld [vmem:[%s5 + $0x28] sm:$0xff]
  %v901 = vld [vmem:[%s5 + $0x30] sm:$0xff]
  %v902 = vld [vmem:[%s5 + $0x38] sm:$0xff]
  %v903 = vld [vmem:[%s5 + $0x40] sm:$0xff]
  %v904 = vld [vmem:[%s5 + $0x48] sm:$0xff]
  %v905 = vld [vmem:[%s5 + $0x50] sm:$0xff]
  %v906 = vld [vmem:[%s5 + $0x58] sm:$0xff]
  %v907 = vld [vmem:[%s5 + $0x60] sm:$0xff]
  %v908 = vld [vmem:[%s5 + $0x68] sm:$0xff]
  %v909 = vld [vmem:[%s5 + $0x70] sm:$0xff]
  %v910 = vld [vmem:[%s5 + $0x78] sm:$0xff]
  %v911 = vld [vmem:[%s6] sm:$0x1]
  %v913 = vperm.slane %v911, 0
  %915 = vmatpush.msra.mxu0 %v910
  %916 = vmatpush.msra.mxu0 %v909
  %917 = vmatpush.msra.mxu0 %v908
  %918 = vmatpush.msra.mxu0 %v907
  %919 = vmatpush.msra.mxu0 %v906
  %920 = vmatpush.msra.mxu0 %v905
  %921 = vmatpush.msra.mxu0 %v904
  %922 = vmatpush.msra.mxu0 %v903
  %923 = vmatpush.msra.mxu0 %v902
  %924 = vmatpush.msra.mxu0 %v901
  %925 = vmatpush.msra.mxu0 %v900
  %926 = vmatpush.msra.mxu0 %v899
  %927 = vmatpush.msra.mxu0 %v898
  %928 = vmatpush.msra.mxu0 %v897
  %929 = vmatpush.msra.mxu0 %v896
  %930 = vmatpush.msra.mxu0 %v895
  %931 = vmatmul.f32.gmra.mxu0 %v816
  %v932 = vpop.f32.mrf.mxu0
  %v933 = vadd.f32 %v913, %v932
  %934 = vmatmul.f32.gmra.mxu0 %v818
  %v935 = vpop.f32.mrf.mxu0
  %v936 = vadd.f32 %v913, %v935
  %937 = vmatmul.f32.gmra.mxu0 %v821
  %v938 = vpop.f32.mrf.mxu0
  %v939 = vadd.f32 %v913, %v938
  %940 = vmatmul.f32.gmra.mxu0 %v823
  %v941 = vpop.f32.mrf.mxu0
  %v942 = vadd.f32 %v913, %v941
  %943 = vmatmul.f32.gmra.mxu0 %v826
  %v944 = vpop.f32.mrf.mxu0
  %v945 = vadd.f32 %v913, %v944
  %946 = vmatmul.f32.gmra.mxu0 %v828
  %v947 = vpop.f32.mrf.mxu0
  %v948 = vadd.f32 %v913, %v947
  %949 = vmatmul.f32.gmra.mxu0 %v831
  %v950 = vpop.f32.mrf.mxu0
  %v951 = vadd.f32 %v913, %v950
  %952 = vmatmul.f32.gmra.mxu0 %v833
  %v953 = vpop.f32.mrf.mxu0
  %v954 = vadd.f32 %v913, %v953
  %955 = vmatmul.f32.gmra.mxu0 %v836
  %v956 = vpop.f32.mrf.mxu0
  %v957 = vadd.f32 %v913, %v956
  %958 = vmatmul.f32.gmra.mxu0 %v838
  %v959 = vpop.f32.mrf.mxu0
  %v960 = vadd.f32 %v913, %v959
  %961 = vmatmul.f32.gmra.mxu0 %v841
  %v962 = vpop.f32.mrf.mxu0
  %v963 = vadd.f32 %v913, %v962
  %964 = vmatmul.f32.gmra.mxu0 %v843
  %v965 = vpop.f32.mrf.mxu0
  %v966 = vadd.f32 %v913, %v965
  %967 = vmatmul.f32.gmra.mxu0 %v846
  %v968 = vpop.f32.mrf.mxu0
  %v969 = vadd.f32 %v913, %v968
  %970 = vmatmul.f32.gmra.mxu0 %v848
  %v971 = vpop.f32.mrf.mxu0
  %v972 = vadd.f32 %v913, %v971
  %973 = vmatmul.f32.gmra.mxu0 %v851
  %v974 = vpop.f32.mrf.mxu0
  %v975 = vadd.f32 %v913, %v974
  %976 = vmatmul.f32.gmra.mxu0 %v853
  %v977 = vpop.f32.mrf.mxu0
  %v978 = vadd.f32 %v913, %v977
  %979 = vmatmul.f32.gmra.mxu0 %v856
  %v980 = vpop.f32.mrf.mxu0
  %v981 = vadd.f32 %v913, %v980
  %982 = vmatmul.f32.gmra.mxu0 %v858
  %v983 = vpop.f32.mrf.mxu0
  %v984 = vadd.f32 %v913, %v983
  %985 = vmatmul.f32.gmra.mxu0 %v861
  %v986 = vpop.f32.mrf.mxu0
  %v987 = vadd.f32 %v913, %v986
  %988 = vmatmul.f32.gmra.mxu0 %v863
  %v989 = vpop.f32.mrf.mxu0
  %v990 = vadd.f32 %v913, %v989
  %991 = vmatmul.f32.gmra.mxu0 %v866
  %v992 = vpop.f32.mrf.mxu0
  %v993 = vadd.f32 %v913, %v992
  %994 = vmatmul.f32.gmra.mxu0 %v868
  %v995 = vpop.f32.mrf.mxu0
  %v996 = vadd.f32 %v913, %v995
  %997 = vmatmul.f32.gmra.mxu0 %v871
  %v998 = vpop.f32.mrf.mxu0
  %v999 = vadd.f32 %v913, %v998
  %1000 = vmatmul.f32.gmra.mxu0 %v873
  %v1001 = vpop.f32.mrf.mxu0
  %v1002 = vadd.f32 %v913, %v1001
  %1003 = vmatmul.f32.gmra.mxu0 %v876
  %v1004 = vpop.f32.mrf.mxu0
  %v1005 = vadd.f32 %v913, %v1004
  %1006 = vmatmul.f32.gmra.mxu0 %v878
  %v1007 = vpop.f32.mrf.mxu0
  %v1008 = vadd.f32 %v913, %v1007
  %1009 = vmatmul.f32.gmra.mxu0 %v881
  %v1010 = vpop.f32.mrf.mxu0
  %v1011 = vadd.f32 %v913, %v1010
  %1012 = vmatmul.f32.gmra.mxu0 %v883
  %v1013 = vpop.f32.mrf.mxu0
  %v1014 = vadd.f32 %v913, %v1013
  %1015 = vmatmul.f32.gmra.mxu0 %v886
  %v1016 = vpop.f32.mrf.mxu0
  %v1017 = vadd.f32 %v913, %v1016
  %1018 = vmatmul.f32.gmra.mxu0 %v888
  %v1019 = vpop.f32.mrf.mxu0
  %v1020 = vadd.f32 %v913, %v1019
  %1021 = vmatmul.f32.gmra.mxu0 %v891
  %v1022 = vpop.f32.mrf.mxu0
  %v1023 = vadd.f32 %v913, %v1022
  %1024 = vmatmul.f32.gmra.mxu0 %v893
  %v1025 = vpop.f32.mrf.mxu0
  %v1026 = vadd.f32 %v913, %v1025
  %1027 = vdwg.mxu0
  %v1028 = vmax.f32 %v933, 0.0
  %v1029 = vmax.f32 %v936, 0.0
  %v1030 = vmax.f32 %v939, 0.0
  %v1031 = vmax.f32 %v942, 0.0
  %v1032 = vmax.f32 %v945, 0.0
  %v1033 = vmax.f32 %v948, 0.0
  %v1034 = vmax.f32 %v951, 0.0
  %v1035 = vmax.f32 %v954, 0.0
  %v1036 = vmax.f32 %v957, 0.0
  %v1037 = vmax.f32 %v960, 0.0
  %v1038 = vmax.f32 %v963, 0.0
  %v1039 = vmax.f32 %v966, 0.0
  %v1040 = vmax.f32 %v969, 0.0
  %v1041 = vmax.f32 %v972, 0.0
  %v1042 = vmax.f32 %v975, 0.0
  %v1043 = vmax.f32 %v978, 0.0
  %v1044 = vmax.f32 %v981, 0.0
  %v1045 = vmax.f32 %v984, 0.0
  %v1046 = vmax.f32 %v987, 0.0
  %v1047 = vmax.f32 %v990, 0.0
  %v1048 = vmax.f32 %v993, 0.0
  %v1049 = vmax.f32 %v996, 0.0
  %v1050 = vmax.f32 %v999, 0.0
  %v1051 = vmax.f32 %v1002, 0.0
  %v1052 = vmax.f32 %v1005, 0.0
  %v1053 = vmax.f32 %v1008, 0.0
  %v1054 = vmax.f32 %v1011, 0.0
  %v1055 = vmax.f32 %v1014, 0.0
  %v1056 = vmax.f32 %v1017, 0.0
  %v1057 = vmax.f32 %v1020, 0.0
  %v1058 = vmax.f32 %v1023, 0.0
  %v1059 = vmax.f32 %v1026, 0.0
  %v1060 = vld [vmem:[%s2] sm:$0xff]
  %v1061 = vld [vmem:[%s2 + $0x8] sm:$0xff]
  %v1062 = vpack.c.bf16 %v1029, %v1028
  %v1063 = vpack.c.bf16 %v1031, %v1030
  %v1064 = vpack.c.bf16 %v1033, %v1032
  %v1065 = vpack.c.bf16 %v1035, %v1034
  %v1066 = vpack.c.bf16 %v1037, %v1036
  %v1067 = vpack.c.bf16 %v1039, %v1038
  %v1068 = vpack.c.bf16 %v1041, %v1040
  %v1069 = vpack.c.bf16 %v1043, %v1042
  %v1070 = vpack.c.bf16 %v1045, %v1044
  %v1071 = vpack.c.bf16 %v1047, %v1046
  %v1072 = vpack.c.bf16 %v1049, %v1048
  %v1073 = vpack.c.bf16 %v1051, %v1050
  %v1074 = vpack.c.bf16 %v1053, %v1052
  %v1075 = vpack.c.bf16 %v1055, %v1054
  %v1076 = vpack.c.bf16 %v1057, %v1056
  %v1077 = vpack.c.bf16 %v1059, %v1058
  %v1080 = vunpack.c.l.b16 %v1060
  %v1081 = vunpack.c.h.b16 %v1060
  %v1082 = vunpack.c.l.b16 %v1061
  %v1083 = vunpack.c.h.b16 %v1061
  %v1084 = vpack.c.b16 %v1082, %v1080
  %v1085 = vpack.c.b16 %v1083, %v1081
  %1088 = vmatpush.bf16.msra.mxu0 %v1069
  %1089 = vmatpush.bf16.msra.mxu0 %v1068
  %1090 = vmatpush.bf16.msra.mxu0 %v1067
  %1091 = vmatpush.bf16.msra.mxu0 %v1066
  %1092 = vmatpush.bf16.msra.mxu0 %v1065
  %1093 = vmatpush.bf16.msra.mxu0 %v1064
  %1094 = vmatpush.bf16.msra.mxu0 %v1063
  %1095 = vmatpush.bf16.msra.mxu0 %v1062
  %1096 = vmatmul.bf16.gmra.mxu0 %v1084
  %v1097 = vpop.f32.mrf.mxu0
  %v1098 = vadd.f32 0.0, %v1097
  %v1099 = vpop.f32.mrf.mxu0
  %v1100 = vadd.f32 0.0, %v1099
  %1101 = vdwg.mxu0
  %1102 = vmatpush.bf16.msra.mxu0 %v1077
  %1103 = vmatpush.bf16.msra.mxu0 %v1076
  %1104 = vmatpush.bf16.msra.mxu0 %v1075
  %1105 = vmatpush.bf16.msra.mxu0 %v1074
  %1106 = vmatpush.bf16.msra.mxu0 %v1073
  %1107 = vmatpush.bf16.msra.mxu0 %v1072
  %1108 = vmatpush.bf16.msra.mxu0 %v1071
  %1109 = vmatpush.bf16.msra.mxu0 %v1070
  %1110 = vmatmul.bf16.gmra.mxu0 %v1085
  %v1111 = vpop.f32.mrf.mxu0
  %v1112 = vadd.f32 %v1098, %v1111
  %v1113 = vpop.f32.mrf.mxu0
  %v1114 = vadd.f32 %v1100, %v1113
  %1115 = vdwg.mxu0
  %v1116 = vmax.f32 %v1112, 0.0
  %v1117 = vmax.f32 %v1114, 0.0
  %v1118 = vld [vmem:[%s7] sm:$0xff]
  %v1119 = vld [vmem:[%s7 + $0x8] sm:$0xff]
  %v1120 = vld [vmem:[%s7 + $0x10] sm:$0xff]
  %v1121 = vld [vmem:[%s7 + $0x18] sm:$0xff]
  %v1122 = vld [vmem:[%s7 + $0x20] sm:$0xff]
  %v1123 = vld [vmem:[%s7 + $0x28] sm:$0xff]
  %v1124 = vld [vmem:[%s7 + $0x30] sm:$0xff]
  %v1125 = vld [vmem:[%s7 + $0x38] sm:$0xff]
  %v1126 = vld [vmem:[%s7 + $0x40] sm:$0xff]
  %v1127 = vld [vmem:[%s7 + $0x48] sm:$0xff]
  %v1128 = vld [vmem:[%s7 + $0x50] sm:$0xff]
  %v1129 = vld [vmem:[%s7 + $0x58] sm:$0xff]
  %v1130 = vld [vmem:[%s7 + $0x60] sm:$0xff]
  %v1131 = vld [vmem:[%s7 + $0x68] sm:$0xff]
  %v1132 = vld [vmem:[%s7 + $0x70] sm:$0xff]
  %v1133 = vld [vmem:[%s7 + $0x78] sm:$0xff]
  %v1134 = vld [vmem:[%s8] sm:$0x1]
  %v1136 = vperm.slane %v1134, 0
  %1138 = vmatpush.msra.mxu0 %v1133
  %1139 = vmatpush.msra.mxu0 %v1132
  %1140 = vmatpush.msra.mxu0 %v1131
  %1141 = vmatpush.msra.mxu0 %v1130
  %1142 = vmatpush.msra.mxu0 %v1129
  %1143 = vmatpush.msra.mxu0 %v1128
  %1144 = vmatpush.msra.mxu0 %v1127
  %1145 = vmatpush.msra.mxu0 %v1126
  %1146 = vmatpush.msra.mxu0 %v1125
  %1147 = vmatpush.msra.mxu0 %v1124
  %1148 = vmatpush.msra.mxu0 %v1123
  %1149 = vmatpush.msra.mxu0 %v1122
  %1150 = vmatpush.msra.mxu0 %v1121
  %1151 = vmatpush.msra.mxu0 %v1120
  %1152 = vmatpush.msra.mxu0 %v1119
  %1153 = vmatpush.msra.mxu0 %v1118
  %1154 = vmatmul.f32.gmra.mxu0 %v1116
  %v1155 = vpop.f32.mrf.mxu0
  %v1156 = vadd.f32 %v1136, %v1155
  %1157 = vmatmul.f32.gmra.mxu0 %v1117
  %v1158 = vpop.f32.mrf.mxu0
  %v1159 = vadd.f32 %v1136, %v1158
  %1160 = vdwg.mxu0
  %v1161 = vmax.f32 %v1156, 0.0
  %v1162 = vmax.f32 %v1159, 0.0
  %v1163 = vld [vmem:[%s9] sm:$0xff]
  %v1164 = vld [vmem:[%s9 + $0x8] sm:$0xff]
  %v1165 = vld [vmem:[%s9 + $0x10] sm:$0xff]
  %v1166 = vld [vmem:[%s9 + $0x18] sm:$0xff]
  %v1167 = vld [vmem:[%s9 + $0x20] sm:$0xff]
  %v1168 = vld [vmem:[%s9 + $0x28] sm:$0xff]
  %v1169 = vld [vmem:[%s9 + $0x30] sm:$0xff]
  %v1170 = vld [vmem:[%s9 + $0x38] sm:$0xff]
  %v1171 = vld [vmem:[%s9 + $0x40] sm:$0xff]
  %v1172 = vld [vmem:[%s9 + $0x48] sm:$0xff]
  %v1173 = vld [vmem:[%s9 + $0x50] sm:$0xff]
  %v1174 = vld [vmem:[%s9 + $0x58] sm:$0xff]
  %v1175 = vld [vmem:[%s9 + $0x60] sm:$0xff]
  %v1176 = vld [vmem:[%s9 + $0x68] sm:$0xff]
  %v1177 = vld [vmem:[%s9 + $0x70] sm:$0xff]
  %v1178 = vld [vmem:[%s9 + $0x78] sm:$0xff]
  %v1179 = vld [vmem:[%s10] sm:$0x1]
  %v1181 = vperm.slane %v1179, 0
  %1183 = vmatpush.msra.mxu0 %v1178
  %1184 = vmatpush.msra.mxu0 %v1177
  %1185 = vmatpush.msra.mxu0 %v1176
  %1186 = vmatpush.msra.mxu0 %v1175
  %1187 = vmatpush.msra.mxu0 %v1174
  %1188 = vmatpush.msra.mxu0 %v1173
  %1189 = vmatpush.msra.mxu0 %v1172
  %1190 = vmatpush.msra.mxu0 %v1171
  %1191 = vmatpush.msra.mxu0 %v1170
  %1192 = vmatpush.msra.mxu0 %v1169
  %1193 = vmatpush.msra.mxu0 %v1168
  %1194 = vmatpush.msra.mxu0 %v1167
  %1195 = vmatpush.msra.mxu0 %v1166
  %1196 = vmatpush.msra.mxu0 %v1165
  %1197 = vmatpush.msra.mxu0 %v1164
  %1198 = vmatpush.msra.mxu0 %v1163
  %1199 = vmatmul.f32.gmra.mxu0 %v1161
  %v1200 = vpop.f32.mrf.mxu0
  %v1201 = vadd.f32 %v1181, %v1200
  %1202 = vmatmul.f32.gmra.mxu0 %v1162
  %v1203 = vpop.f32.mrf.mxu0
  %v1204 = vadd.f32 %v1181, %v1203
  %1205 = vdwg.mxu0
  %1206 = vst [vmem:[%s11] sm:$0xff] %v1201
  %1207 = vst [vmem:[%s11 + $0x8] sm:$0xff] %v1204
  // Predicated region
  $region46: #{gcn_forward.1} parent=0 // pred_check
    _
  $region47: #{gcn_forward.1} parent=0 // pred_check_branch
    %1209 = sbr.rel (0) target = $region49
  $region48: #{gcn_forward.1} parent=0 // pred_region
    _
  $region49: #{gcn_forward.1} parent=0 // pred_fallthru
    _
  // Predicated region
  $region50: #{gcn_forward.1} parent=0 // pred_check
    _
  $region51: #{gcn_forward.1} parent=0 // pred_check_branch
    %1211 = sbr.rel (0) target = $region53
  $region52: #{gcn_forward.1} parent=0 // pred_region
    _
  $region53: #{gcn_forward.1} parent=0 // pred_fallthru
    _

</llo_original>
